<compile_context>
chip_gen: v6e
topology: v6e:2x2x1
jax: 0.10.0
libtpu: 0.0.40
codegen_flags: <defaults>
</compile_context>

<pallas_src>
import jax
import jax.numpy as jnp
from jax.experimental import pallas as pl
from jax.experimental.pallas import tpu as pltpu


# ---------------------------------------------------------------------------
# Kernels
# ---------------------------------------------------------------------------
def _fused_kernel(genre_ref, artist_ref, other_ref,
                  wg_ref, wa_ref, wo_ref, b1_ref,
                  w2_ref, b2_ref, w3_ref, b3_ref, out_ref):
    """Small-vocab path: embeddings + concat + Linear1 algebraically folded."""
    bf16 = jnp.bfloat16
    f32 = jnp.float32
    # Activations arrive in their native dtype (single HBM read each); cast to bf16
    # in-register for the MXU, accumulate in f32.
    h1 = jnp.dot(genre_ref[...].astype(bf16), wg_ref[...], preferred_element_type=f32)
    h1 = h1 + jnp.dot(artist_ref[...].astype(bf16), wa_ref[...], preferred_element_type=f32)
    h1 = h1 + jnp.dot(other_ref[...].astype(bf16), wo_ref[...], preferred_element_type=f32)
    h1 = jnp.maximum(h1 + b1_ref[...], 0.0)
    # Dropout(0.2) is the identity in eval/inference mode.
    # TODO(synk): training-mode dropout (pltpu.prng_seed + pltpu.stateful_bernoulli) not implemented.
    h2 = jnp.dot(h1.astype(bf16), w2_ref[...], preferred_element_type=f32) + b2_ref[...]
    h2 = jnp.maximum(h2, 0.0)
    out = jnp.dot(h2.astype(bf16), w3_ref[...], preferred_element_type=f32) + b3_ref[...]
    out_ref[...] = out.astype(out_ref.dtype)


def _unfused_kernel(genre_ref, artist_ref, other_ref,
                    weg_ref, beg_ref, wea_ref, bea_ref,
                    w1g_ref, w1a_ref, w1o_ref, b1_ref,
                    w2_ref, b2_ref, w3_ref, b3_ref, out_ref):
    """Large-vocab path: embedding Linears kept separate (no 4x weight/FLOP blow-up)."""
    bf16 = jnp.bfloat16
    f32 = jnp.float32
    g_emb = jnp.dot(genre_ref[...].astype(bf16), weg_ref[...],
                    preferred_element_type=f32) + beg_ref[...]
    a_emb = jnp.dot(artist_ref[...].astype(bf16), wea_ref[...],
                    preferred_element_type=f32) + bea_ref[...]
    h1 = jnp.dot(g_emb.astype(bf16), w1g_ref[...], preferred_element_type=f32)
    h1 = h1 + jnp.dot(a_emb.astype(bf16), w1a_ref[...], preferred_element_type=f32)
    h1 = h1 + jnp.dot(other_ref[...].astype(bf16), w1o_ref[...], preferred_element_type=f32)
    h1 = jnp.maximum(h1 + b1_ref[...], 0.0)
    # Dropout(0.2) == identity in eval mode.
    h2 = jnp.dot(h1.astype(bf16), w2_ref[...], preferred_element_type=f32) + b2_ref[...]
    h2 = jnp.maximum(h2, 0.0)
    out = jnp.dot(h2.astype(bf16), w3_ref[...], preferred_element_type=f32) + b3_ref[...]
    out_ref[...] = out.astype(out_ref.dtype)


# ---------------------------------------------------------------------------
# Parameters (same shapes / init style as the PyTorch module) + preparation
# ---------------------------------------------------------------------------
def init_params(num_genres: int, num_artists: int,
                genre_embedding_dim: int = 16, artist_embedding_dim: int = 16,
                hidden_dim: int = 64, seed: int = 0):
    key = jax.random.PRNGKey(seed)
    ks = jax.random.split(key, 10)
    input_dim = genre_embedding_dim + artist_embedding_dim + 4

    def lin(kw, kb, fan_in, fan_out):
        bound = 1.0 / jnp.sqrt(fan_in)
        w = jax.random.uniform(kw, (fan_in, fan_out), jnp.float32, -bound, bound)
        b = jax.random.uniform(kb, (1, fan_out), jnp.float32, -bound, bound)
        return w, b

    wg, bg = lin(ks[0], ks[1], num_genres, genre_embedding_dim)
    wa, ba = lin(ks[2], ks[3], num_artists, artist_embedding_dim)
    w1, b1 = lin(ks[4], ks[5], input_dim, hidden_dim)
    w2, b2 = lin(ks[6], ks[7], hidden_dim, hidden_dim // 2)
    w3, b3 = lin(ks[8], ks[9], hidden_dim // 2, 6)
    return dict(wg=wg, bg=bg, wa=wa, ba=ba,
                w1=w1, b1=b1, w2=w2, b2=b2, w3=w3, b3=b3)


def prepare_params(raw, genre_embedding_dim: int = 16, artist_embedding_dim: int = 16,
                   fuse_embeddings=None, fuse_vocab_threshold: int = 512,
                   param_dtype=jnp.bfloat16):
    """Cast weights to bf16; fold the embedding Linears only when vocabs are small."""
    eg, ea = genre_embedding_dim, artist_embedding_dim
    num_genres = raw["wg"].shape[0]
    num_artists = raw["wa"].shape[0]
    if fuse_embeddings is None:
        fuse_embeddings = (num_genres + num_artists) <= fuse_vocab_threshold

    w1 = raw["w1"]
    w1_g, w1_a, w1_o = w1[:eg], w1[eg:eg + ea], w1[eg + ea:]
    common = dict(
        w2=raw["w2"].astype(param_dtype), b2=raw["b2"].astype(jnp.float32),
        w3=raw["w3"].astype(param_dtype), b3=raw["b3"].astype(jnp.float32))

    if fuse_embeddings:
        return dict(
            fused=True,
            wg_f=(raw["wg"] @ w1_g).astype(param_dtype),         # (Ng, H1)
            wa_f=(raw["wa"] @ w1_a).astype(param_dtype),         # (Na, H1)
            wo_f=w1_o.astype(param_dtype),                       # (4, H1)
            b1_f=(raw["bg"] @ w1_g + raw["ba"] @ w1_a + raw["b1"]).astype(jnp.float32),
            **common)
    return dict(
        fused=False,
        weg=raw["wg"].astype(param_dtype), beg=raw["bg"].astype(jnp.float32),
        wea=raw["wa"].astype(param_dtype), bea=raw["ba"].astype(jnp.float32),
        w1g=w1_g.astype(param_dtype), w1a=w1_a.astype(param_dtype),
        w1o=w1_o.astype(param_dtype), b1=raw["b1"].astype(jnp.float32),
        **common)


# ---------------------------------------------------------------------------
# Batch-tile selection: MiB-scale DMAs, double-buffered footprint under scoped VMEM
# ---------------------------------------------------------------------------
def _choose_batch_tile(batch: int, bytes_per_row: int, *,
                       target_tile_bytes: int = 4 << 20,
                       max_act_vmem_bytes: int = 12 << 20) -> int:
    tb = target_tile_bytes // max(bytes_per_row, 1)
    # 2x for Pallas double-buffering of the activation/output streams.
    tb = min(tb, max_act_vmem_bytes // (2 * max(bytes_per_row, 1)))
    tb = max(256, (tb // 256) * 256)       # keep batch tile a multiple of 8 (of 256)
    if batch <= tb:
        return batch                       # full-batch block (block dim == array dim is legal)
    return tb


# ---------------------------------------------------------------------------
# Forward wrapper
# ---------------------------------------------------------------------------
def music_recommendation_forward(params, genre, artist,
                                 album_type, popularity, length, years_old,
                                 *, batch_tile=None, core_parallel: bool = False):
    # torch.stack(..., dim=1): tiny (B, 4) materialization; genre/artist pass through
    # untouched (no concat, no wrapper-side dtype cast).
    other = jnp.stack([album_type.astype(jnp.float32),
                       popularity.astype(jnp.float32),
                       length.astype(jnp.float32),
                       years_old.astype(jnp.float32)], axis=1)

    B, Ng = genre.shape
    Na = artist.shape[1]
    w2, b2, w3, b3 = params["w2"], params["b2"], params["w3"], params["b3"]
    H1, H2 = w2.shape
    NO = w3.shape[1]

    in_itemsize = max(genre.dtype.itemsize, artist.dtype.itemsize)
    bytes_per_row = (Ng + Na + 4) * in_itemsize + NO * 4
    tb = batch_tile if batch_tile is not None else _choose_batch_tile(B, bytes_per_row)
    grid = (pl.cdiv(B, tb),)

    def act_spec(cols):
        return pl.BlockSpec((tb, cols), lambda i: (i, 0))

    def full_spec(a):   # weights/biases: VMEM-resident across all grid steps
        return pl.BlockSpec(a.shape, lambda i: (0, 0))

    if params["fused"]:
        kernel = _fused_kernel
        weights = (params["wg_f"], params["wa_f"], params["wo_f"], params["b1_f"],
                   w2, b2, w3, b3)
        flops_per_row = 2 * ((Ng + Na + 4) * H1 + H1 * H2 + H2 * NO)
    else:
        kernel = _unfused_kernel
        eg = params["weg"].shape[1]
        ea = params["wea"].shape[1]
        weights = (params["weg"], params["beg"], params["wea"], params["bea"],
                   params["w1g"], params["w1a"], params["w1o"], params["b1"],
                   w2, b2, w3, b3)
        flops_per_row = 2 * (Ng * eg + Na * ea + (eg + ea + 4) * H1 + H1 * H2 + H2 * NO)

    weight_bytes = sum(int(w.size) * w.dtype.itemsize for w in weights)
    cost = pl.CostEstimate(flops=int(B) * flops_per_row, transcendentals=0,
                           bytes_accessed=int(B) * bytes_per_row + weight_bytes)

    # CORE_PARALLEL engages both TensorCores on v7x; "parallel" is the portable default.
    semantics = (pltpu.CORE_PARALLEL if core_parallel else "parallel",)

    out = pl.pallas_call(
        kernel,
        out_shape=jax.ShapeDtypeStruct((B, NO), jnp.float32),
        grid=grid,
        in_specs=[act_spec(Ng), act_spec(Na), act_spec(4)]
                 + [full_spec(w) for w in weights],
        out_specs=pl.BlockSpec((tb, NO), lambda i: (i, 0)),
        compiler_params=pltpu.CompilerParams(
            dimension_semantics=semantics,
            vmem_limit_bytes=32 * 1024 * 1024),
        cost_estimate=cost,
    )(genre, artist, other, *weights)

    cls, reg = jnp.split(out, [3], axis=1)
    return {"classification": cls, "regression": reg}


# ---------------------------------------------------------------------------
# Pure-JAX (unfused, f32) reference of the PyTorch forward, for sanity checks.
# ---------------------------------------------------------------------------
def _reference_forward(raw, genre, artist, album_type, popularity, length, years_old):
    genre_emb = genre @ raw["wg"] + raw["bg"]
    artist_emb = artist @ raw["wa"] + raw["ba"]
    other = jnp.stack([album_type.astype(jnp.float32), popularity, length, years_old], axis=1)
    combined = jnp.concatenate([genre_emb, artist_emb, other], axis=1)
    h1 = jnp.maximum(combined @ raw["w1"] + raw["b1"], 0.0)
    h2 = jnp.maximum(h1 @ raw["w2"] + raw["b2"], 0.0)
    return h2 @ raw["w3"] + raw["b3"]


if __name__ == "__main__":
    B = 8
    NUM_GENRES = 10
    NUM_ARTISTS = 12

    raw_params = init_params(NUM_GENRES, NUM_ARTISTS, seed=0)

    key = jax.random.PRNGKey(0)
    k1, k2, k3, k4, k5, k6 = jax.random.split(key, 6)
    genre = jax.random.uniform(k1, (B, NUM_GENRES), jnp.float32)     # multi-hot-ish
    artist = jax.random.uniform(k2, (B, NUM_ARTISTS), jnp.float32)
    album_type = jax.random.randint(k3, (B,), 0, 2)                  # int -> .float()
    popularity = jax.random.uniform(k4, (B,), jnp.float32)
    length = jax.random.uniform(k5, (B,), jnp.float32)
    years_old = jax.random.uniform(k6, (B,), jnp.float32)

    ref = _reference_forward(raw_params, genre, artist, album_type,
                             popularity, length, years_old)

    # --- Fused (small-vocab) path -----------------------------------------
    params_fused = prepare_params(raw_params)
    assert params_fused["fused"]
    out = music_recommendation_forward(params_fused, genre, artist, album_type,
                                       popularity, length, years_old)
    jax.block_until_ready(out)
    assert out["classification"].shape == (B, 3)
    assert out["regression"].shape == (B, 3)
    got = jnp.concatenate([out["classification"], out["regression"]], axis=1)
    assert jnp.allclose(got, ref, rtol=5e-2, atol=5e-2), "fused kernel diverged from reference"

    # --- Unfused (large-vocab) path, forced for coverage -------------------
    params_unfused = prepare_params(raw_params, fuse_embeddings=False)
    out_u = music_recommendation_forward(params_unfused, genre, artist, album_type,
                                         popularity, length, years_old)
    jax.block_until_ready(out_u)
    got_u = jnp.concatenate([out_u["classification"], out_u["regression"]], axis=1)
    assert jnp.allclose(got_u, ref, rtol=5e-2, atol=5e-2), "unfused kernel diverged from reference"

    # --- Ragged last batch tile (B % tb != 0): padded rows computed & discarded ---
    B2 = 10
    genre2 = jnp.concatenate([genre, genre[:2]], axis=0)
    artist2 = jnp.concatenate([artist, artist[:2]], axis=0)
    album2 = jnp.concatenate([album_type, album_type[:2]], axis=0)
    pop2 = jnp.concatenate([popularity, popularity[:2]], axis=0)
    len2 = jnp.concatenate([length, length[:2]], axis=0)
    yrs2 = jnp.concatenate([years_old, years_old[:2]], axis=0)
    out_r = music_recommendation_forward(params_fused, genre2, artist2, album2,
                                         pop2, len2, yrs2, batch_tile=8)
    jax.block_until_ready(out_r)
    got_r = jnp.concatenate([out_r["classification"], out_r["regression"]], axis=1)
    ref_r = _reference_forward(raw_params, genre2, artist2, album2, pop2, len2, yrs2)
    assert got_r.shape == (B2, 6)
    assert jnp.all(jnp.isfinite(got_r))
    assert jnp.allclose(got_r, ref_r, rtol=5e-2, atol=5e-2), "ragged-tail path diverged"

    print("KERNEL_OK")
</pallas_src>

<mosaic_0001>
module attributes {stable_mosaic.version = 11 : i64} {
  func.func @_fused_kernel(%arg0: i32, %arg1: memref<8x10xf32, #tpu.memory_space<vmem>>, %arg2: memref<8x12xf32, #tpu.memory_space<vmem>>, %arg3: memref<8x4xf32, #tpu.memory_space<vmem>>, %arg4: memref<10x64xbf16, #tpu.memory_space<vmem>>, %arg5: memref<12x64xbf16, #tpu.memory_space<vmem>>, %arg6: memref<4x64xbf16, #tpu.memory_space<vmem>>, %arg7: memref<1x64xf32, #tpu.memory_space<vmem>>, %arg8: memref<64x32xbf16, #tpu.memory_space<vmem>>, %arg9: memref<1x32xf32, #tpu.memory_space<vmem>>, %arg10: memref<32x6xbf16, #tpu.memory_space<vmem>>, %arg11: memref<1x6xf32, #tpu.memory_space<vmem>>, %arg12: memref<8x6xf32, #tpu.memory_space<vmem>>) attributes {dimension_semantics = [#tpu.dimension_semantics<parallel>], iteration_bounds = array<i64: 1>, scalar_prefetch = 0 : i64, scratch_operands = 0 : i64, tpu.core_type = #tpu.core_type<tc>, window_params = [{transform_indices = @transform_0, window_bounds = array<i64: 8, 10>}, {transform_indices = @transform_1, window_bounds = array<i64: 8, 12>}, {transform_indices = @transform_2, window_bounds = array<i64: 8, 4>}, {pipeline_mode = #tpu.pipeline_mode<synchronous>, transform_indices = @transform_3, window_bounds = array<i64: 10, 64>}, {pipeline_mode = #tpu.pipeline_mode<synchronous>, transform_indices = @transform_4, window_bounds = array<i64: 12, 64>}, {pipeline_mode = #tpu.pipeline_mode<synchronous>, transform_indices = @transform_5, window_bounds = array<i64: 4, 64>}, {pipeline_mode = #tpu.pipeline_mode<synchronous>, transform_indices = @transform_6, window_bounds = array<i64: 1, 64>}, {pipeline_mode = #tpu.pipeline_mode<synchronous>, transform_indices = @transform_7, window_bounds = array<i64: 64, 32>}, {pipeline_mode = #tpu.pipeline_mode<synchronous>, transform_indices = @transform_8, window_bounds = array<i64: 1, 32>}, {pipeline_mode = #tpu.pipeline_mode<synchronous>, transform_indices = @transform_9, window_bounds = array<i64: 32, 6>}, {pipeline_mode = #tpu.pipeline_mode<synchronous>, transform_indices = @transform_10, window_bounds = array<i64: 1, 6>}, {transform_indices = @transform_11, window_bounds = array<i64: 8, 6>}]} {
    %c0 = arith.constant 0 : index
    %c0_0 = arith.constant 0 : index
    %0 = vector.load %arg1[%c0, %c0_0] : memref<8x10xf32, #tpu.memory_space<vmem>>, vector<8x10xf32>
    %1 = arith.truncf %0 : vector<8x10xf32> to vector<8x10xbf16>
    %c0_1 = arith.constant 0 : index
    %c0_2 = arith.constant 0 : index
    %2 = vector.load %arg4[%c0_1, %c0_2] : memref<10x64xbf16, #tpu.memory_space<vmem>>, vector<10x64xbf16>
    %cst = arith.constant dense<0.000000e+00> : vector<8x64xf32>
    %3 = tpu.matmul %1, %2, %cst {dimension_numbers = #tpu.dot_dimension_numbers<[1], [0], [0], [1], [0, 0, 1, 1], [], []>} : vector<8x10xbf16>, vector<10x64xbf16>, vector<8x64xf32> -> vector<8x64xf32>
    %c0_3 = arith.constant 0 : index
    %c0_4 = arith.constant 0 : index
    %4 = vector.load %arg2[%c0_3, %c0_4] : memref<8x12xf32, #tpu.memory_space<vmem>>, vector<8x12xf32>
    %5 = arith.truncf %4 : vector<8x12xf32> to vector<8x12xbf16>
    %c0_5 = arith.constant 0 : index
    %c0_6 = arith.constant 0 : index
    %6 = vector.load %arg5[%c0_5, %c0_6] : memref<12x64xbf16, #tpu.memory_space<vmem>>, vector<12x64xbf16>
    %cst_7 = arith.constant dense<0.000000e+00> : vector<8x64xf32>
    %7 = tpu.matmul %5, %6, %cst_7 {dimension_numbers = #tpu.dot_dimension_numbers<[1], [0], [0], [1], [0, 0, 1, 1], [], []>} : vector<8x12xbf16>, vector<12x64xbf16>, vector<8x64xf32> -> vector<8x64xf32>
    %8 = arith.addf %3, %7 : vector<8x64xf32>
    %c0_8 = arith.constant 0 : index
    %c0_9 = arith.constant 0 : index
    %9 = vector.load %arg3[%c0_8, %c0_9] : memref<8x4xf32, #tpu.memory_space<vmem>>, vector<8x4xf32>
    %10 = arith.truncf %9 : vector<8x4xf32> to vector<8x4xbf16>
    %c0_10 = arith.constant 0 : index
    %c0_11 = arith.constant 0 : index
    %11 = vector.load %arg6[%c0_10, %c0_11] : memref<4x64xbf16, #tpu.memory_space<vmem>>, vector<4x64xbf16>
    %cst_12 = arith.constant dense<0.000000e+00> : vector<8x64xf32>
    %12 = tpu.matmul %10, %11, %cst_12 {dimension_numbers = #tpu.dot_dimension_numbers<[1], [0], [0], [1], [0, 0, 1, 1], [], []>} : vector<8x4xbf16>, vector<4x64xbf16>, vector<8x64xf32> -> vector<8x64xf32>
    %13 = arith.addf %8, %12 : vector<8x64xf32>
    %c0_13 = arith.constant 0 : index
    %c0_14 = arith.constant 0 : index
    %14 = vector.load %arg7[%c0_13, %c0_14] : memref<1x64xf32, #tpu.memory_space<vmem>>, vector<1x64xf32>
    %15 = vector.broadcast %14 : vector<1x64xf32> to vector<8x64xf32>
    %16 = arith.addf %13, %15 : vector<8x64xf32>
    %cst_15 = arith.constant 0.000000e+00 : f32
    %17 = vector.broadcast %cst_15 : f32 to vector<8x64xf32>
    %18 = arith.maximumf %16, %17 : vector<8x64xf32>
    %19 = arith.truncf %18 : vector<8x64xf32> to vector<8x64xbf16>
    %c0_16 = arith.constant 0 : index
    %c0_17 = arith.constant 0 : index
    %20 = vector.load %arg8[%c0_16, %c0_17] : memref<64x32xbf16, #tpu.memory_space<vmem>>, vector<64x32xbf16>
    %cst_18 = arith.constant dense<0.000000e+00> : vector<8x32xf32>
    %21 = tpu.matmul %19, %20, %cst_18 {dimension_numbers = #tpu.dot_dimension_numbers<[1], [0], [0], [1], [0, 0, 1, 1], [], []>} : vector<8x64xbf16>, vector<64x32xbf16>, vector<8x32xf32> -> vector<8x32xf32>
    %c0_19 = arith.constant 0 : index
    %c0_20 = arith.constant 0 : index
    %22 = vector.load %arg9[%c0_19, %c0_20] : memref<1x32xf32, #tpu.memory_space<vmem>>, vector<1x32xf32>
    %23 = vector.broadcast %22 : vector<1x32xf32> to vector<8x32xf32>
    %24 = arith.addf %21, %23 : vector<8x32xf32>
    %cst_21 = arith.constant 0.000000e+00 : f32
    %25 = vector.broadcast %cst_21 : f32 to vector<8x32xf32>
    %26 = arith.maximumf %24, %25 : vector<8x32xf32>
    %27 = arith.truncf %26 : vector<8x32xf32> to vector<8x32xbf16>
    %c0_22 = arith.constant 0 : index
    %c0_23 = arith.constant 0 : index
    %28 = vector.load %arg10[%c0_22, %c0_23] : memref<32x6xbf16, #tpu.memory_space<vmem>>, vector<32x6xbf16>
    %cst_24 = arith.constant dense<0.000000e+00> : vector<8x6xf32>
    %29 = tpu.matmul %27, %28, %cst_24 {dimension_numbers = #tpu.dot_dimension_numbers<[1], [0], [0], [1], [0, 0, 1, 1], [], []>} : vector<8x32xbf16>, vector<32x6xbf16>, vector<8x6xf32> -> vector<8x6xf32>
    %c0_25 = arith.constant 0 : index
    %c0_26 = arith.constant 0 : index
    %30 = vector.load %arg11[%c0_25, %c0_26] : memref<1x6xf32, #tpu.memory_space<vmem>>, vector<1x6xf32>
    %31 = vector.broadcast %30 : vector<1x6xf32> to vector<8x6xf32>
    %32 = arith.addf %29, %31 : vector<8x6xf32>
    %c0_27 = arith.constant 0 : index
    %c0_28 = arith.constant 0 : index
    %33 = vector.load %arg12[%c0_27, %c0_28] : memref<8x6xf32, #tpu.memory_space<vmem>>, vector<8x6xf32>
    tpu.vector_store %arg12[%c0_27, %c0_28], %32 {strides = array<i32>} : memref<8x6xf32, #tpu.memory_space<vmem>>, vector<8x6xf32>,
    return
  }
  func.func @transform_0(%arg0: i32) -> (i32, i32) {
    %c0_i32 = arith.constant 0 : i32
    %c0_i32_0 = arith.constant 0 : i32
    return %arg0, %c0_i32 : i32, i32
  }
  func.func @transform_1(%arg0: i32) -> (i32, i32) {
    %c0_i32 = arith.constant 0 : i32
    %c0_i32_0 = arith.constant 0 : i32
    return %arg0, %c0_i32 : i32, i32
  }
  func.func @transform_2(%arg0: i32) -> (i32, i32) {
    %c0_i32 = arith.constant 0 : i32
    %c0_i32_0 = arith.constant 0 : i32
    return %arg0, %c0_i32 : i32, i32
  }
  func.func @transform_3(%arg0: i32) -> (i32, i32) {
    %c0_i32 = arith.constant 0 : i32
    %c0_i32_0 = arith.constant 0 : i32
    %c0_i32_1 = arith.constant 0 : i32
    return %c0_i32, %c0_i32_0 : i32, i32
  }
  func.func @transform_4(%arg0: i32) -> (i32, i32) {
    %c0_i32 = arith.constant 0 : i32
    %c0_i32_0 = arith.constant 0 : i32
    %c0_i32_1 = arith.constant 0 : i32
    return %c0_i32, %c0_i32_0 : i32, i32
  }
  func.func @transform_5(%arg0: i32) -> (i32, i32) {
    %c0_i32 = arith.constant 0 : i32
    %c0_i32_0 = arith.constant 0 : i32
    %c0_i32_1 = arith.constant 0 : i32
    return %c0_i32, %c0_i32_0 : i32, i32
  }
  func.func @transform_6(%arg0: i32) -> (i32, i32) {
    %c0_i32 = arith.constant 0 : i32
    %c0_i32_0 = arith.constant 0 : i32
    %c0_i32_1 = arith.constant 0 : i32
    return %c0_i32, %c0_i32_0 : i32, i32
  }
  func.func @transform_7(%arg0: i32) -> (i32, i32) {
    %c0_i32 = arith.constant 0 : i32
    %c0_i32_0 = arith.constant 0 : i32
    %c0_i32_1 = arith.constant 0 : i32
    return %c0_i32, %c0_i32_0 : i32, i32
  }
  func.func @transform_8(%arg0: i32) -> (i32, i32) {
    %c0_i32 = arith.constant 0 : i32
    %c0_i32_0 = arith.constant 0 : i32
    %c0_i32_1 = arith.constant 0 : i32
    return %c0_i32, %c0_i32_0 : i32, i32
  }
  func.func @transform_9(%arg0: i32) -> (i32, i32) {
    %c0_i32 = arith.constant 0 : i32
    %c0_i32_0 = arith.constant 0 : i32
    %c0_i32_1 = arith.constant 0 : i32
    return %c0_i32, %c0_i32_0 : i32, i32
  }
  func.func @transform_10(%arg0: i32) -> (i32, i32) {
    %c0_i32 = arith.constant 0 : i32
    %c0_i32_0 = arith.constant 0 : i32
    %c0_i32_1 = arith.constant 0 : i32
    return %c0_i32, %c0_i32_0 : i32, i32
  }
  func.func @transform_11(%arg0: i32) -> (i32, i32) {
    %c0_i32 = arith.constant 0 : i32
    %c0_i32_0 = arith.constant 0 : i32
    return %arg0, %c0_i32 : i32, i32
  }
}

</mosaic_0001>

<llo_original>
// kernel: tpu_custom_call.1
$region0: #{tpu_custom_call.1}
  #allocation0 [shape = 'u32[]', space=smem, size = 0x4, offset = 0x4, fixed_abs, tag = 'smem constant byte address 0x4 - core index']
  #allocation1 [shape = 'u32[144,128]{1,0:T(1,128)}', space=vmem, size = 0x12000, scoped, tag = 'internal scratch']
  %s0 = inlined_call_operand.vmem [shape: f32[8,10], index: 0, kind: input, shape index: {}]
  %s1 = inlined_call_operand.vmem [shape: f32[8,12], index: 1, kind: input, shape index: {}]
  %s2 = inlined_call_operand.vmem [shape: f32[8,4], index: 2, kind: input, shape index: {}]
  %s3 = inlined_call_operand.vmem [shape: bf16[10,64], index: 3, kind: input, shape index: {}]
  %s4 = inlined_call_operand.vmem [shape: bf16[12,64], index: 4, kind: input, shape index: {}]
  %s5 = inlined_call_operand.vmem [shape: bf16[4,64], index: 5, kind: input, shape index: {}]
  %s6 = inlined_call_operand.vmem [shape: f32[1,64], index: 6, kind: input, shape index: {}]
  %s7 = inlined_call_operand.vmem [shape: bf16[64,32], index: 7, kind: input, shape index: {}]
  %s8 = inlined_call_operand.vmem [shape: f32[1,32], index: 8, kind: input, shape index: {}]
  %s9 = inlined_call_operand.vmem [shape: bf16[32,6], index: 9, kind: input, shape index: {}]
  %s10 = inlined_call_operand.vmem [shape: f32[1,6], index: 10, kind: input, shape index: {}]
  %s11 = inlined_call_operand.hbm [shape: f32[8,6], index: 11, kind: output, shape index: {}]
  %s12 = sld [smem:[#allocation0]]
  $region54: #{tpu_custom_call.1} parent=0
    _
  %s14 = ssub.s32 1, %s12
  %s15 = scalar_select 0, %s14, %s12
  $region1: #{tpu_custom_call.1} parent=0
    #allocation2 [shape = 'u8[4096]{0}', space=vmem, size = 0x1000, scoped, tag = 'output window, operand 0, single buffered']
    #allocation3 [shape = 's32[1]{0}', space=sflag, size = 0x4, scoped, tag = 'scoped memory for tpu_custom_call.1']
    %16 = vsyncpa [#allocation3], 0
    // Predicated region
    $region2: #{tpu_custom_call.1} parent=1 // pred_check
      _
    $region3: #{tpu_custom_call.1} parent=1 // pred_check_branch
      %18 = sbr.rel (0) target = $region5
    $region4: #{tpu_custom_call.1} parent=1 // pred_region
      _
    $region5: #{tpu_custom_call.1} parent=1 // pred_fallthru
      _
    // Predicated region
    $region6: #{tpu_custom_call.1} parent=1 // pred_check
      _
    $region7: #{tpu_custom_call.1} parent=1 // pred_check_branch
      %20 = sbr.rel (0) target = $region9
    $region8: #{tpu_custom_call.1} parent=1 // pred_region
      _
    $region9: #{tpu_custom_call.1} parent=1 // pred_fallthru
      _
    // Predicated region
    $region10: #{tpu_custom_call.1} parent=1 // pred_check
      _
    $region11: #{tpu_custom_call.1} parent=1 // pred_check_branch
      %22 = sbr.rel (0) target = $region13
    $region12: #{tpu_custom_call.1} parent=1 // pred_region
      _
    $region13: #{tpu_custom_call.1} parent=1 // pred_fallthru
      _
    // Predicated region
    $region14: #{tpu_custom_call.1} parent=1 // pred_check
      _
    $region15: #{tpu_custom_call.1} parent=1 // pred_check_branch
      %24 = sbr.rel (0) target = $region17
    $region16: #{tpu_custom_call.1} parent=1 // pred_region
      _
    $region17: #{tpu_custom_call.1} parent=1 // pred_fallthru
      _
    // Predicated region
    $region18: #{tpu_custom_call.1} parent=1 // pred_check
      _
    $region19: #{tpu_custom_call.1} parent=1 // pred_check_branch
      %26 = sbr.rel (0) target = $region21
    $region20: #{tpu_custom_call.1} parent=1 // pred_region
      _
    $region21: #{tpu_custom_call.1} parent=1 // pred_fallthru
      _
    // Predicated region
    $region22: #{tpu_custom_call.1} parent=1 // pred_check
      _
    $region23: #{tpu_custom_call.1} parent=1 // pred_check_branch
      %28 = sbr.rel (0) target = $region25
    $region24: #{tpu_custom_call.1} parent=1 // pred_region
      _
    $region25: #{tpu_custom_call.1} parent=1 // pred_fallthru
      _
    // Predicated region
    $region26: #{tpu_custom_call.1} parent=1 // pred_check
      _
    $region27: #{tpu_custom_call.1} parent=1 // pred_check_branch
      %30 = sbr.rel (0) target = $region29
    $region28: #{tpu_custom_call.1} parent=1 // pred_region
      _
    $region29: #{tpu_custom_call.1} parent=1 // pred_fallthru
      _
    // Predicated region
    $region30: #{tpu_custom_call.1} parent=1 // pred_check
      _
    $region31: #{tpu_custom_call.1} parent=1 // pred_check_branch
      %32 = sbr.rel (0) target = $region33
    $region32: #{tpu_custom_call.1} parent=1 // pred_region
      _
    $region33: #{tpu_custom_call.1} parent=1 // pred_fallthru
      _
    // Predicated region
    $region34: #{tpu_custom_call.1} parent=1 // pred_check
      _
    $region35: #{tpu_custom_call.1} parent=1 // pred_check_branch
      %34 = sbr.rel (0) target = $region37
    $region36: #{tpu_custom_call.1} parent=1 // pred_region
      _
    $region37: #{tpu_custom_call.1} parent=1 // pred_fallthru
      _
    // Predicated region
    $region38: #{tpu_custom_call.1} parent=1 // pred_check
      _
    $region39: #{tpu_custom_call.1} parent=1 // pred_check_branch
      %36 = sbr.rel (0) target = $region41
    $region40: #{tpu_custom_call.1} parent=1 // pred_region
      _
    $region41: #{tpu_custom_call.1} parent=1 // pred_fallthru
      _
    // Predicated region
    $region42: #{tpu_custom_call.1} parent=1 // pred_check
      _
    $region43: #{tpu_custom_call.1} parent=1 // pred_check_branch
      %38 = sbr.rel (0) target = $region45
    $region44: #{tpu_custom_call.1} parent=1 // pred_region
      _
    $region45: #{tpu_custom_call.1} parent=1 // pred_fallthru
      _
    %v40 = vld [vmem:[%s0] sm:$0xff]
    %v41 = vpack.c.bf16 %v40, %v40
    %v42 = vld [vmem:[%s3] sm:$0xf]
    %v43 = vld [vmem:[%s3 + $0x4] sm:$0x1]
    %v44 = vld [vmem:[%s1] sm:$0xff]
    %v45 = vpack.c.bf16 %v44, %v44
    %v46 = vld [vmem:[%s4] sm:$0xf]
    %v47 = vld [vmem:[%s4 + $0x4] sm:$0x3]
    %v50 = vunpack.c.l.b16 %v46
    %v51 = vunpack.c.l.b16 %v47
    %v52 = vpack.c.b16 %v51, %v50
    %vm53 = vcmask 97280
    %v55 = vsel %vm53, %v45, 0
    %vm57 = vcmask 1045504
    %v59 = vsel %vm57, %v52, 0
    %61 = vmatprep.subr.bf16.mxu0 0
    %62 = vmatpush1.bf16.msra.mxu0 0
    %63 = vmatprep.subr.bf16.mxu0 0
    %64 = vmatpush1.bf16.msra.mxu0 0
    %65 = vmatprep.subr.bf16.mxu0 0
    %66 = vmatpush1.bf16.msra.mxu0 0
    %67 = vmatprep.subr.bf16.mxu0 0
    %68 = vmatpush1.bf16.msra.mxu0 0
    %69 = vmatprep.subr.bf16.mxu0 0
    %70 = vmatpush1.bf16.msra.mxu0 0
    %71 = vmatprep.subr.bf16.mxu0 0
    %72 = vmatpush1.bf16.msra.mxu0 0
    %73 = vmatprep.subr.bf16.mxu0 0
    %74 = vmatpush1.bf16.msra.mxu0 0
    %75 = vmatprep.subr.bf16.mxu0 0
    %76 = vmatpush1.bf16.msra.mxu0 %v59
    %77 = vmatprep.subr.bf16.mxu0 0
    %78 = vmatpush2.bf16.msra.mxu0 0
    %79 = vmatprep.subr.bf16.mxu0 0
    %80 = vmatpush2.bf16.msra.mxu0 0
    %81 = vmatprep.subr.bf16.mxu0 0
    %82 = vmatpush2.bf16.msra.mxu0 0
    %83 = vmatprep.subr.bf16.mxu0 0
    %84 = vmatpush2.bf16.msra.mxu0 0
    %85 = vmatprep.subr.bf16.mxu0 0
    %86 = vmatpush2.bf16.msra.mxu0 0
    %87 = vmatprep.subr.bf16.mxu0 0
    %88 = vmatpush2.bf16.msra.mxu0 0
    %89 = vmatprep.subr.bf16.mxu0 0
    %90 = vmatpush2.bf16.msra.mxu0 0
    %91 = vmatprep.subr.bf16.mxu0 0
    %92 = vmatpush2.bf16.msra.mxu0 0
    %93 = vmatprep.mubr.bf16.mxu0 0
    %94 = vmatmul.mubr.bf16.gmra.mxu0 %v55
    %v95 = vpop.f32.mrf.mxu0
    %v96 = vadd.f32 0.0, %v95
    %v97 = vpop.f32.mrf.mxu0
    %v98 = vpop.f32.mrf.mxu0
    %v99 = vpop.f32.mrf.mxu0
    %100 = vdwg.mxu0
    %v103 = vunpack.c.l.b16 %v42
    %v104 = vunpack.c.l.b16 %v43
    %v105 = vpack.c.b16 %v104, %v103
    %vm106 = vcmask 80896
    %v108 = vsel %vm106, %v41, 0
    %vm110 = vcmask 1044480
    %v112 = vsel %vm110, %v105, 0
    %114 = vmatprep.subr.bf16.mxu0 0
    %115 = vmatpush1.bf16.msra.mxu0 0
    %116 = vmatprep.subr.bf16.mxu0 0
    %117 = vmatpush1.bf16.msra.mxu0 0
    %118 = vmatprep.subr.bf16.mxu0 0
    %119 = vmatpush1.bf16.msra.mxu0 0
    %120 = vmatprep.subr.bf16.mxu0 0
    %121 = vmatpush1.bf16.msra.mxu0 0
    %122 = vmatprep.subr.bf16.mxu0 0
    %123 = vmatpush1.bf16.msra.mxu0 0
    %124 = vmatprep.subr.bf16.mxu0 0
    %125 = vmatpush1.bf16.msra.mxu0 0
    %126 = vmatprep.subr.bf16.mxu0 0
    %127 = vmatpush1.bf16.msra.mxu0 0
    %128 = vmatprep.subr.bf16.mxu0 0
    %129 = vmatpush1.bf16.msra.mxu0 %v112
    %130 = vmatprep.subr.bf16.mxu0 0
    %131 = vmatpush2.bf16.msra.mxu0 0
    %132 = vmatprep.subr.bf16.mxu0 0
    %133 = vmatpush2.bf16.msra.mxu0 0
    %134 = vmatprep.subr.bf16.mxu0 0
    %135 = vmatpush2.bf16.msra.mxu0 0
    %136 = vmatprep.subr.bf16.mxu0 0
    %137 = vmatpush2.bf16.msra.mxu0 0
    %138 = vmatprep.subr.bf16.mxu0 0
    %139 = vmatpush2.bf16.msra.mxu0 0
    %140 = vmatprep.subr.bf16.mxu0 0
    %141 = vmatpush2.bf16.msra.mxu0 0
    %142 = vmatprep.subr.bf16.mxu0 0
    %143 = vmatpush2.bf16.msra.mxu0 0
    %144 = vmatprep.subr.bf16.mxu0 0
    %145 = vmatpush2.bf16.msra.mxu0 0
    %146 = vmatprep.mubr.bf16.mxu0 0
    %147 = vmatmul.mubr.bf16.gmra.mxu0 %v108
    %v148 = vpop.f32.mrf.mxu0
    %v149 = vadd.f32 %v96, %v148
    %v150 = vpop.f32.mrf.mxu0
    %v151 = vpop.f32.mrf.mxu0
    %v152 = vpop.f32.mrf.mxu0
    %153 = vdwg.mxu0
    %v154 = vld [vmem:[%s2] sm:$0xff]
    %v155 = vpack.c.bf16 %v154, %v154
    %v156 = vld [vmem:[%s5] sm:$0x3]
    %vm157 = vcmask 31744
    %v159 = vsel %vm157, %v155, 0
    %vm161 = vcmask 1041408
    %v163 = vsel %vm161, %v156, 0
    %165 = vmatprep.subr.bf16.mxu0 0
    %166 = vmatpush1.bf16.msra.mxu0 0
    %167 = vmatprep.subr.bf16.mxu0 0
    %168 = vmatpush1.bf16.msra.mxu0 0
    %169 = vmatprep.subr.bf16.mxu0 0
    %170 = vmatpush1.bf16.msra.mxu0 0
    %171 = vmatprep.subr.bf16.mxu0 0
    %172 = vmatpush1.bf16.msra.mxu0 0
    %173 = vmatprep.subr.bf16.mxu0 0
    %174 = vmatpush1.bf16.msra.mxu0 0
    %175 = vmatprep.subr.bf16.mxu0 0
    %176 = vmatpush1.bf16.msra.mxu0 0
    %177 = vmatprep.subr.bf16.mxu0 0
    %178 = vmatpush1.bf16.msra.mxu0 0
    %179 = vmatprep.subr.bf16.mxu0 0
    %180 = vmatpush1.bf16.msra.mxu0 %v163
    %181 = vmatprep.subr.bf16.mxu0 0
    %182 = vmatpush2.bf16.msra.mxu0 0
    %183 = vmatprep.subr.bf16.mxu0 0
    %184 = vmatpush2.bf16.msra.mxu0 0
    %185 = vmatprep.subr.bf16.mxu0 0
    %186 = vmatpush2.bf16.msra.mxu0 0
    %187 = vmatprep.subr.bf16.mxu0 0
    %188 = vmatpush2.bf16.msra.mxu0 0
    %189 = vmatprep.subr.bf16.mxu0 0
    %190 = vmatpush2.bf16.msra.mxu0 0
    %191 = vmatprep.subr.bf16.mxu0 0
    %192 = vmatpush2.bf16.msra.mxu0 0
    %193 = vmatprep.subr.bf16.mxu0 0
    %194 = vmatpush2.bf16.msra.mxu0 0
    %195 = vmatprep.subr.bf16.mxu0 0
    %196 = vmatpush2.bf16.msra.mxu0 0
    %197 = vmatprep.mubr.bf16.mxu0 0
    %198 = vmatmul.mubr.bf16.gmra.mxu0 %v159
    %v199 = vpop.f32.mrf.mxu0
    %v200 = vadd.f32 0.0, %v199
    %v201 = vpop.f32.mrf.mxu0
    %v202 = vpop.f32.mrf.mxu0
    %v203 = vpop.f32.mrf.mxu0
    %204 = vdwg.mxu0
    %v205 = vadd.f32 %v149, %v200
    %v206 = vld [vmem:[%s6] sm:$0x1]
    %v208 = vlaneseq
    %v209 = vshrl.u32 %v208, 7
    %v210 = vsub.s32 0, %v209
    %v211 = vrot.slane %v206, %v210
    %v213 = vadd.f32 %v205, %v211
    %v214 = vmax.f32 %v213, 0.0
    %v215 = vpack.c.bf16 %v214, %v214
    %v216 = vld [vmem:[%s7] sm:$0xf]
    %v217 = vld [vmem:[%s7 + $0x4] sm:$0xf]
    %v218 = vld [vmem:[%s7 + $0x8] sm:$0xf]
    %v219 = vld [vmem:[%s7 + $0xc] sm:$0xf]
    %v220 = vld [vmem:[%s7 + $0x10] sm:$0xf]
    %v221 = vld [vmem:[%s7 + $0x14] sm:$0xf]
    %v222 = vld [vmem:[%s7 + $0x18] sm:$0xf]
    %v223 = vld [vmem:[%s7 + $0x1c] sm:$0xf]
    %v224 = vld [vmem:[%s8] sm:$0x1]
    %v226 = vlaneseq
    %v227 = vshrl.u32 %v226, 7
    %v228 = vsub.s32 0, %v227
    %v229 = vrot.slane %v224, %v228
    %v239 = vunpack.c.l.b16 %v216
    %v240 = vunpack.c.l.b16 %v217
    %v241 = vunpack.c.l.b16 %v218
    %v242 = vunpack.c.l.b16 %v219
    %v243 = vunpack.c.l.b16 %v220
    %v244 = vunpack.c.l.b16 %v221
    %v245 = vunpack.c.l.b16 %v222
    %v246 = vunpack.c.l.b16 %v223
    %v247 = vpack.c.b16 %v240, %v239
    %v248 = vpack.c.b16 %v242, %v241
    %v249 = vpack.c.b16 %v244, %v243
    %v250 = vpack.c.b16 %v246, %v245
    %vm255 = vcmask 523264
    %v257 = vsel %vm255, %v215, 0
    %259 = vmatprep.subr.bf16.mxu0 0
    %260 = vmatpush1.bf16.msra.mxu0 0
    %261 = vmatprep.subr.bf16.mxu0 0
    %262 = vmatpush1.bf16.msra.mxu0 0
    %263 = vmatprep.subr.bf16.mxu0 0
    %264 = vmatpush1.bf16.msra.mxu0 0
    %265 = vmatprep.subr.bf16.mxu0 0
    %266 = vmatpush1.bf16.msra.mxu0 0
    %267 = vmatprep.subr.bf16.mxu0 0
    %268 = vmatpush1.bf16.msra.mxu0 %v250
    %269 = vmatprep.subr.bf16.mxu0 0
    %270 = vmatpush1.bf16.msra.mxu0 %v249
    %271 = vmatprep.subr.bf16.mxu0 0
    %272 = vmatpush1.bf16.msra.mxu0 %v248
    %273 = vmatprep.subr.bf16.mxu0 0
    %274 = vmatpush1.bf16.msra.mxu0 %v247
    %275 = vmatprep.subr.bf16.mxu0 0
    %276 = vmatpush2.bf16.msra.mxu0 0
    %277 = vmatprep.subr.bf16.mxu0 0
    %278 = vmatpush2.bf16.msra.mxu0 0
    %279 = vmatprep.subr.bf16.mxu0 0
    %280 = vmatpush2.bf16.msra.mxu0 0
    %281 = vmatprep.subr.bf16.mxu0 0
    %282 = vmatpush2.bf16.msra.mxu0 0
    %283 = vmatprep.subr.bf16.mxu0 0
    %284 = vmatpush2.bf16.msra.mxu0 0
    %285 = vmatprep.subr.bf16.mxu0 0
    %286 = vmatpush2.bf16.msra.mxu0 0
    %287 = vmatprep.subr.bf16.mxu0 0
    %288 = vmatpush2.bf16.msra.mxu0 0
    %289 = vmatprep.subr.bf16.mxu0 0
    %290 = vmatpush2.bf16.msra.mxu0 0
    %291 = vmatprep.mubr.bf16.mxu0 0
    %292 = vmatmul.mubr.bf16.gmra.mxu0 %v257
    %v293 = vpop.f32.mrf.mxu0
    %v294 = vadd.f32 %v229, %v293
    %v295 = vpop.f32.mrf.mxu0
    %v296 = vpop.f32.mrf.mxu0
    %v297 = vpop.f32.mrf.mxu0
    %298 = vdwg.mxu0
    %v299 = vmax.f32 %v294, 0.0
    %v300 = vpack.c.bf16 %v299, %v299
    %v301 = vld [vmem:[%s9] sm:$0xf]
    %v302 = vld [vmem:[%s9 + $0x4] sm:$0xf]
    %v303 = vld [vmem:[%s9 + $0x8] sm:$0xf]
    %v304 = vld [vmem:[%s9 + $0xc] sm:$0xf]
    %v305 = vld [vmem:[%s10] sm:$0x1]
    %v307 = vlaneseq
    %v308 = vshrl.u32 %v307, 7
    %v309 = vsub.s32 0, %v308
    %v310 = vrot.slane %v305, %v309
    %v316 = vunpack.c.l.b16 %v301
    %v317 = vunpack.c.l.b16 %v302
    %v318 = vunpack.c.l.b16 %v303
    %v319 = vunpack.c.l.b16 %v304
    %v320 = vpack.c.b16 %v317, %v316
    %v321 = vpack.c.b16 %v319, %v318
    %vm324 = vcmask 261120
    %v326 = vsel %vm324, %v300, 0
    %328 = vmatprep.subr.bf16.mxu0 0
    %329 = vmatpush1.bf16.msra.mxu0 0
    %330 = vmatprep.subr.bf16.mxu0 0
    %331 = vmatpush1.bf16.msra.mxu0 0
    %332 = vmatprep.subr.bf16.mxu0 0
    %333 = vmatpush1.bf16.msra.mxu0 0
    %334 = vmatprep.subr.bf16.mxu0 0
    %335 = vmatpush1.bf16.msra.mxu0 0
    %336 = vmatprep.subr.bf16.mxu0 0
    %337 = vmatpush1.bf16.msra.mxu0 0
    %338 = vmatprep.subr.bf16.mxu0 0
    %339 = vmatpush1.bf16.msra.mxu0 0
    %340 = vmatprep.subr.bf16.mxu0 0
    %341 = vmatpush1.bf16.msra.mxu0 %v321
    %342 = vmatprep.subr.bf16.mxu0 0
    %343 = vmatpush1.bf16.msra.mxu0 %v320
    %344 = vmatprep.subr.bf16.mxu0 0
    %345 = vmatpush2.bf16.msra.mxu0 0
    %346 = vmatprep.subr.bf16.mxu0 0
    %347 = vmatpush2.bf16.msra.mxu0 0
    %348 = vmatprep.subr.bf16.mxu0 0
    %349 = vmatpush2.bf16.msra.mxu0 0
    %350 = vmatprep.subr.bf16.mxu0 0
    %351 = vmatpush2.bf16.msra.mxu0 0
    %352 = vmatprep.subr.bf16.mxu0 0
    %353 = vmatpush2.bf16.msra.mxu0 0
    %354 = vmatprep.subr.bf16.mxu0 0
    %355 = vmatpush2.bf16.msra.mxu0 0
    %356 = vmatprep.subr.bf16.mxu0 0
    %357 = vmatpush2.bf16.msra.mxu0 0
    %358 = vmatprep.subr.bf16.mxu0 0
    %359 = vmatpush2.bf16.msra.mxu0 0
    %360 = vmatprep.mubr.bf16.mxu0 0
    %361 = vmatmul.mubr.bf16.gmra.mxu0 %v326
    %v362 = vpop.f32.mrf.mxu0
    %v363 = vadd.f32 %v310, %v362
    %v364 = vpop.f32.mrf.mxu0
    %v365 = vpop.f32.mrf.mxu0
    %v366 = vpop.f32.mrf.mxu0
    %367 = vdwg.mxu0
    %vm368 = vcmask 48128
    %369 = vst.msk [vmem:[#allocation2] sm:$0xff] %vm368, %v363
    // Predicated region
    $region46: #{tpu_custom_call.1} parent=1 // pred_check
      _
    $region47: #{tpu_custom_call.1} parent=1 // pred_check_branch
      %371 = sbr.rel (0) target = $region49
    $region48: #{tpu_custom_call.1} parent=1 // pred_region
      %s373 = ssub.s32 128, 128
      %374 = vsyncadd [#allocation3], %s373
      %s376 = sshll.u32 [#allocation2], 4
      %s377 = int_to_ptr.vmem [resolvable:$true] %s376
      %379 = dma.vmem_to_hbm [thread:$0]  %s377, 128, %s11, [#allocation3]
    $region49: #{tpu_custom_call.1} parent=1 // pred_fallthru
      _
    // Predicated region
    $region50: #{tpu_custom_call.1} parent=1 // pred_check
      _
    $region51: #{tpu_custom_call.1} parent=1 // pred_check_branch
      %381 = sbr.rel (0) target = $region53
    $region52: #{tpu_custom_call.1} parent=1 // pred_region
      %382 = dma.done [#allocation3], 128
    $region53: #{tpu_custom_call.1} parent=1 // pred_fallthru
      _
    %383 = vsyncpa [#allocation3], 1

</llo_original>
